<compile_context>
chip_gen: v7x
topology: tpu7x:2x2x1
jax: 0.10.0
libtpu: 0.0.40
codegen_flags: <defaults>
</compile_context>

<pallas_src>
import functools
import math

import jax
import jax.numpy as jnp
from jax.experimental import pallas as pl
from jax.experimental.pallas import tpu as pltpu


def _gconv_kernel(x_ref, w_ref, adjcat_ref, b_ref, o_ref, *,
                  batch, num_nodes, num_groups, out_features):
    # x_ref     : (B*N, Cin)     all batches, flattened over nodes
    # w_ref     : (Cin, G*Cout)  weight, pre-transposed vs. torch Linear
    # adjcat_ref: (N, G*N)       adj_cat[n, g*N + m] = adj[g, n, m]
    # b_ref     : (1, Cout)
    # o_ref     : (B*N, Cout)
    # Stage 1: one wide matmul for all batches and all groups.
    xw = jnp.dot(x_ref[...], w_ref[...],
                 preferred_element_type=jnp.float32)          # (B*N, G*Cout)
    adj_cat = adjcat_ref[...]                                  # (N, G*N)
    bias = b_ref[...]                                          # (1, Cout)

    for b in range(batch):                                     # B static & tiny -> unrolled
        xw_b = xw[b * num_nodes:(b + 1) * num_nodes, :]        # (N, G*Cout)
        # Restack (N, G*Cout) -> (G*N, Cout): row g*N + m holds xw_b[m, g-th col block].
        # Lane slice + sublane concat: goes to the otherwise-idle XLU slot.
        stacked = jnp.concatenate(
            [xw_b[:, g * out_features:(g + 1) * out_features]
             for g in range(num_groups)],
            axis=0)                                            # (G*N, Cout)
        # Stage 2: one matmul folds the adjacency contraction AND the group sum.
        out_b = jnp.dot(adj_cat, stacked,
                        preferred_element_type=jnp.float32) + bias   # (N, Cout)
        o_ref[b * num_nodes:(b + 1) * num_nodes, :] = out_b.astype(o_ref.dtype)


def gconv(x, w_t, adj, bias):
    """x: (B, N, Cin), w_t: (Cin, G*Cout), adj: (G, N, N), bias: (Cout,)."""
    B, N, Cin = x.shape
    G = adj.shape[0]
    Cout = bias.shape[0]
    assert w_t.shape == (Cin, G * Cout)
    assert adj.shape == (G, N, N)

    # One-time, outside-kernel rearrangements (all free / constant-parameter work).
    x_flat = x.reshape(B * N, Cin)
    adj_cat = jnp.transpose(adj, (1, 0, 2)).reshape(N, G * N)  # adj_cat[n, g*N+m] = adj[g,n,m]
    bias2d = bias.reshape(1, Cout)

    kernel = functools.partial(_gconv_kernel, batch=B, num_nodes=N,
                               num_groups=G, out_features=Cout)

    vmem_spec = pl.BlockSpec(memory_space=pltpu.MemorySpace.VMEM)
    out_flat = pl.pallas_call(
        kernel,
        out_shape=jax.ShapeDtypeStruct((B * N, Cout), x.dtype),
        in_specs=[vmem_spec, vmem_spec, vmem_spec, vmem_spec],
        out_specs=vmem_spec,
        compiler_params=pltpu.CompilerParams(
            vmem_limit_bytes=32 * 1024 * 1024),
    )(x_flat, w_t, adj_cat, bias2d)
    return out_flat.reshape(B, N, Cout)


def gconv_ref(x, w_t, adj, bias):
    """Pure-JAX reference matching the PyTorch forward exactly."""
    B, N, Cin = x.shape
    G = adj.shape[0]
    Cout = bias.shape[0]
    xw = x @ w_t                                           # (B, N, G*Cout)
    xw = xw.reshape(B, N, G, Cout).transpose(0, 2, 1, 3)   # (B, G, N, Cout)
    y = jnp.einsum("gnm,bgmc->bgnc", adj, xw)              # (B, G, N, Cout)
    return y.sum(axis=1) + bias                            # (B, N, Cout)


if __name__ == "__main__":
    # Small shapes consistent with the module: batch=2, nodes=16, in=32, out=32, groups=2.
    B, N, Cin, Cout, G = 2, 16, 32, 32, 2

    key = jax.random.PRNGKey(0)
    k_x, k_w, k_b, k_a = jax.random.split(key, 4)

    # Deterministic parameter init mirroring reset_parameters():
    #   torch Linear weight shape (G*Cout, Cin); xavier_uniform bound = sqrt(6/(fan_in+fan_out))
    fan_in, fan_out = Cin, G * Cout
    xav = math.sqrt(6.0 / (fan_in + fan_out))
    w_torch = jax.random.uniform(k_w, (G * Cout, Cin), jnp.float32, -xav, xav)
    w_t = w_torch.T                                        # (Cin, G*Cout), y = x @ W.T

    b_bound = 1.0 / math.sqrt(fan_in)
    bias = jax.random.uniform(k_b, (Cout,), jnp.float32, -b_bound, b_bound)

    # Normalized adjacency (G, N, N): random nonneg, row-normalized.
    adj_raw = jax.random.uniform(k_a, (G, N, N), jnp.float32, 0.0, 1.0)
    adj = adj_raw / adj_raw.sum(axis=-1, keepdims=True)

    x = jax.random.normal(k_x, (B, N, Cin), jnp.float32)

    out = gconv(x, w_t, adj, bias)
    out = jax.block_until_ready(out)

    ref = gconv_ref(x, w_t, adj, bias)
    assert out.shape == (B, N, Cout)
    assert jnp.allclose(out, ref, atol=1e-4, rtol=1e-4)

    print("KERNEL_OK")
</pallas_src>

<mosaic_0001>
module attributes {stable_mosaic.version = 11 : i64} {
  func.func @_gconv_kernel(%arg0: memref<32x32xf32, #tpu.memory_space<vmem>>, %arg1: memref<32x64xf32, #tpu.memory_space<vmem>>, %arg2: memref<16x32xf32, #tpu.memory_space<vmem>>, %arg3: memref<1x32xf32, #tpu.memory_space<vmem>>, %arg4: memref<32x32xf32, #tpu.memory_space<vmem>>) attributes {dimension_semantics = [], scalar_prefetch = 0 : i64, scratch_operands = 0 : i64, tpu.core_type = #tpu.core_type<tc>} {
    %c0 = arith.constant 0 : index
    %c0_0 = arith.constant 0 : index
    %0 = vector.load %arg0[%c0, %c0_0] : memref<32x32xf32, #tpu.memory_space<vmem>>, vector<32x32xf32>
    %c0_1 = arith.constant 0 : index
    %c0_2 = arith.constant 0 : index
    %1 = vector.load %arg1[%c0_1, %c0_2] : memref<32x64xf32, #tpu.memory_space<vmem>>, vector<32x64xf32>
    %cst = arith.constant dense<0.000000e+00> : vector<32x64xf32>
    %2 = tpu.matmul %0, %1, %cst {dimension_numbers = #tpu.dot_dimension_numbers<[1], [0], [0], [1], [0, 0, 1, 1], [], []>} : vector<32x32xf32>, vector<32x64xf32>, vector<32x64xf32> -> vector<32x64xf32>
    %c0_3 = arith.constant 0 : index
    %c0_4 = arith.constant 0 : index
    %3 = vector.load %arg2[%c0_3, %c0_4] : memref<16x32xf32, #tpu.memory_space<vmem>>, vector<16x32xf32>
    %c0_5 = arith.constant 0 : index
    %c0_6 = arith.constant 0 : index
    %4 = vector.load %arg3[%c0_5, %c0_6] : memref<1x32xf32, #tpu.memory_space<vmem>>, vector<1x32xf32>
    %5 = vector.extract_strided_slice %2 {offsets = [0, 0], sizes = [16, 64], strides = [1, 1]} : vector<32x64xf32> to vector<16x64xf32>
    %6 = vector.extract_strided_slice %5 {offsets = [0, 0], sizes = [16, 32], strides = [1, 1]} : vector<16x64xf32> to vector<16x32xf32>
    %7 = vector.extract_strided_slice %5 {offsets = [0, 32], sizes = [16, 32], strides = [1, 1]} : vector<16x64xf32> to vector<16x32xf32>
    %8 = tpu.concatenate %6, %7 in 0 : vector<16x32xf32>, vector<16x32xf32> -> vector<32x32xf32>
    %cst_7 = arith.constant dense<0.000000e+00> : vector<16x32xf32>
    %9 = tpu.matmul %3, %8, %cst_7 {dimension_numbers = #tpu.dot_dimension_numbers<[1], [0], [0], [1], [0, 0, 1, 1], [], []>} : vector<16x32xf32>, vector<32x32xf32>, vector<16x32xf32> -> vector<16x32xf32>
    %10 = vector.broadcast %4 : vector<1x32xf32> to vector<16x32xf32>
    %11 = arith.addf %9, %10 : vector<16x32xf32>
    %c0_8 = arith.constant 0 : index
    %c0_9 = arith.constant 0 : index
    %12 = vector.load %arg4[%c0_8, %c0_9] : memref<32x32xf32, #tpu.memory_space<vmem>>, vector<16x32xf32>
    tpu.vector_store %arg4[%c0_8, %c0_9], %11 {strides = array<i32>} : memref<32x32xf32, #tpu.memory_space<vmem>>, vector<16x32xf32>,
    %13 = vector.extract_strided_slice %2 {offsets = [16, 0], sizes = [16, 64], strides = [1, 1]} : vector<32x64xf32> to vector<16x64xf32>
    %14 = vector.extract_strided_slice %13 {offsets = [0, 0], sizes = [16, 32], strides = [1, 1]} : vector<16x64xf32> to vector<16x32xf32>
    %15 = vector.extract_strided_slice %13 {offsets = [0, 32], sizes = [16, 32], strides = [1, 1]} : vector<16x64xf32> to vector<16x32xf32>
    %16 = tpu.concatenate %14, %15 in 0 : vector<16x32xf32>, vector<16x32xf32> -> vector<32x32xf32>
    %cst_10 = arith.constant dense<0.000000e+00> : vector<16x32xf32>
    %17 = tpu.matmul %3, %16, %cst_10 {dimension_numbers = #tpu.dot_dimension_numbers<[1], [0], [0], [1], [0, 0, 1, 1], [], []>} : vector<16x32xf32>, vector<32x32xf32>, vector<16x32xf32> -> vector<16x32xf32>
    %18 = vector.broadcast %4 : vector<1x32xf32> to vector<16x32xf32>
    %19 = arith.addf %17, %18 : vector<16x32xf32>
    %c16 = arith.constant 16 : index
    %c0_11 = arith.constant 0 : index
    %20 = vector.load %arg4[%c16, %c0_11] : memref<32x32xf32, #tpu.memory_space<vmem>>, vector<16x32xf32>
    tpu.vector_store %arg4[%c16, %c0_11], %19 {strides = array<i32>} : memref<32x32xf32, #tpu.memory_space<vmem>>, vector<16x32xf32>,
    return
  }
}

</mosaic_0001>

<llo_original>
// kernel: tpu_custom_call.1
$region0: #{tpu_custom_call.1}
  #allocation0 [shape = 'u32[]', space=smem, size = 0x4, offset = 0x4, fixed_abs, tag = 'smem constant byte address 0x4 - core index']
  #allocation1 [shape = 'u32[144,128]{1,0:T(1,128)}', space=vmem, size = 0x12000, scoped, tag = 'internal scratch']
  %s0 = inlined_call_operand.hbm [shape: f32[32,32], index: 0, kind: input, shape index: {}]
  %s1 = inlined_call_operand.hbm [shape: f32[32,64], index: 1, kind: input, shape index: {}]
  %s2 = inlined_call_operand.hbm [shape: f32[16,32], index: 2, kind: input, shape index: {}]
  %s3 = inlined_call_operand.vmem [shape: f32[1,32], index: 3, kind: input, shape index: {}]
  %s4 = inlined_call_operand.hbm [shape: f32[32,32], index: 4, kind: output, shape index: {}]
  %s5 = sld [smem:[#allocation0]]
  $region38: #{tpu_custom_call.1} parent=0
    _
  %s7 = ssub.s32 1, %s5
  %s8 = scalar_select 0, %s7, %s5
  $region1: #{tpu_custom_call.1} parent=0
    #allocation2 [shape = 'u8[16384]{0}', space=vmem, size = 0x4000, scoped, tag = 'input window, operand 0, single buffered']
    #allocation3 [shape = 's32[1]{0}', space=sflag, size = 0x4, scoped, tag = 'scoped memory for tpu_custom_call.1']
    #allocation4 [shape = 's32[1]{0}', space=sflag, size = 0x4, scoped, tag = 'scoped memory for tpu_custom_call.1']
    #allocation5 [shape = 'u8[16384]{0}', space=vmem, size = 0x4000, scoped, tag = 'input window, operand 1, single buffered']
    #allocation6 [shape = 's32[1]{0}', space=sflag, size = 0x4, scoped, tag = 'scoped memory for tpu_custom_call.1']
    #allocation7 [shape = 'u8[8192]{0}', space=vmem, size = 0x2000, scoped, tag = 'input window, operand 2, single buffered']
    #allocation8 [shape = 'u8[16384]{0}', space=vmem, size = 0x4000, scoped, tag = 'output window, operand 0, single buffered']
    %9 = vsyncpa [#allocation3], 0
    %10 = vsyncpa [#allocation6], 0
    %11 = vsyncpa [#allocation4], 0
    // Predicated region
    $region2: #{tpu_custom_call.1} parent=1 // pred_check
      _
    $region3: #{tpu_custom_call.1} parent=1 // pred_check_branch
      %13 = sbr.rel (0) target = $region5
    $region4: #{tpu_custom_call.1} parent=1 // pred_region
      %s15 = ssub.s32 512, 512
      %16 = vsyncadd [#allocation3], %s15
      %s17 = sshll.u32 [#allocation2], 4
      %s18 = int_to_ptr.vmem [resolvable:$true] %s17
      %23 = dma.hbm_to_vmem [thread:$0]  %s0, 512, %s18, [#allocation3], 128, 128, 8
    $region5: #{tpu_custom_call.1} parent=1 // pred_fallthru
      _
    // Predicated region
    $region6: #{tpu_custom_call.1} parent=1 // pred_check
      _
    $region7: #{tpu_custom_call.1} parent=1 // pred_check_branch
      %25 = sbr.rel (0) target = $region9
    $region8: #{tpu_custom_call.1} parent=1 // pred_region
      %s27 = ssub.s32 512, 512
      %28 = vsyncadd [#allocation6], %s27
      %s29 = sshll.u32 [#allocation5], 4
      %s30 = int_to_ptr.vmem [resolvable:$true] %s29
      %35 = dma.hbm_to_vmem [thread:$0]  %s1, 512, %s30, [#allocation6], 128, 128, 8
    $region9: #{tpu_custom_call.1} parent=1 // pred_fallthru
      _
    // Predicated region
    $region10: #{tpu_custom_call.1} parent=1 // pred_check
      _
    $region11: #{tpu_custom_call.1} parent=1 // pred_check_branch
      %37 = sbr.rel (0) target = $region13
    $region12: #{tpu_custom_call.1} parent=1 // pred_region
      %s39 = ssub.s32 256, 256
      %40 = vsyncadd [#allocation6], %s39
      %s41 = sshll.u32 [#allocation7], 4
      %s42 = int_to_ptr.vmem [resolvable:$true] %s41
      %47 = dma.hbm_to_vmem [thread:$0]  %s2, 256, %s42, [#allocation6], 128, 128, 8
    $region13: #{tpu_custom_call.1} parent=1 // pred_fallthru
      _
    // Predicated region
    $region14: #{tpu_custom_call.1} parent=1 // pred_check
      _
    $region15: #{tpu_custom_call.1} parent=1 // pred_check_branch
      %49 = sbr.rel (0) target = $region17
    $region16: #{tpu_custom_call.1} parent=1 // pred_region
      _
    $region17: #{tpu_custom_call.1} parent=1 // pred_fallthru
      _
    // Predicated region
    $region18: #{tpu_custom_call.1} parent=1 // pred_check
      _
    $region19: #{tpu_custom_call.1} parent=1 // pred_check_branch
      %51 = sbr.rel (0) target = $region21
    $region20: #{tpu_custom_call.1} parent=1 // pred_region
      %52 = dma.done [#allocation3], 512
    $region21: #{tpu_custom_call.1} parent=1 // pred_fallthru
      _
    // Predicated region
    $region22: #{tpu_custom_call.1} parent=1 // pred_check
      _
    $region23: #{tpu_custom_call.1} parent=1 // pred_check_branch
      %54 = sbr.rel (0) target = $region25
    $region24: #{tpu_custom_call.1} parent=1 // pred_region
      %55 = dma.done [#allocation6], 512
    $region25: #{tpu_custom_call.1} parent=1 // pred_fallthru
      _
    // Predicated region
    $region26: #{tpu_custom_call.1} parent=1 // pred_check
      _
    $region27: #{tpu_custom_call.1} parent=1 // pred_check_branch
      %57 = sbr.rel (0) target = $region29
    $region28: #{tpu_custom_call.1} parent=1 // pred_region
      %58 = dma.done [#allocation6], 256
    $region29: #{tpu_custom_call.1} parent=1 // pred_fallthru
      _
    %v59 = vld [vmem:[#allocation2] sm:$0xff]
    %v60 = vld [vmem:[#allocation2 + $0x8] sm:$0xff]
    %v61 = vld [vmem:[#allocation2 + $0x10] sm:$0xff]
    %v62 = vld [vmem:[#allocation2 + $0x18] sm:$0xff]
    %v63 = vld [vmem:[#allocation5] sm:$0xff]
    %v64 = vld [vmem:[#allocation5 + $0x8] sm:$0xff]
    %v65 = vld [vmem:[#allocation5 + $0x10] sm:$0xff]
    %v66 = vld [vmem:[#allocation5 + $0x18] sm:$0xff]
    %vm67 = vcmask 261120
    %v69 = vsel %vm67, %v59, 0
    %v72 = vsel %vm67, %v60, 0
    %v75 = vsel %vm67, %v61, 0
    %v78 = vsel %vm67, %v62, 0
    %80 = vmatprep.subr.mxu0 0.0
    %81 = vmatpush1.msra.mxu0 %v63
    %82 = vmatprep.subr.mxu0 0.0
    %83 = vmatpush1.msra.mxu0 %v64
    %84 = vmatprep.subr.mxu0 0.0
    %85 = vmatpush1.msra.mxu0 %v65
    %86 = vmatprep.subr.mxu0 0.0
    %87 = vmatpush1.msra.mxu0 %v66
    %88 = vmatprep.subr.mxu0 0.0
    %89 = vmatpush1.msra.mxu0 0.0
    %90 = vmatprep.subr.mxu0 0.0
    %91 = vmatpush1.msra.mxu0 0.0
    %92 = vmatprep.subr.mxu0 0.0
    %93 = vmatpush1.msra.mxu0 0.0
    %94 = vmatprep.subr.mxu0 0.0
    %95 = vmatpush1.msra.mxu0 0.0
    %96 = vmatprep.subr.mxu0 0.0
    %97 = vmatpush1.msra.mxu0 0.0
    %98 = vmatprep.subr.mxu0 0.0
    %99 = vmatpush1.msra.mxu0 0.0
    %100 = vmatprep.subr.mxu0 0.0
    %101 = vmatpush1.msra.mxu0 0.0
    %102 = vmatprep.subr.mxu0 0.0
    %103 = vmatpush1.msra.mxu0 0.0
    %104 = vmatprep.subr.mxu0 0.0
    %105 = vmatpush1.msra.mxu0 0.0
    %106 = vmatprep.subr.mxu0 0.0
    %107 = vmatpush1.msra.mxu0 0.0
    %108 = vmatprep.subr.mxu0 0.0
    %109 = vmatpush1.msra.mxu0 0.0
    %110 = vmatprep.subr.mxu0 0.0
    %111 = vmatpush1.msra.mxu0 0.0
    %112 = vmatprep.subr.mxu0 0.0
    %113 = vmatpush1.msra.mxu0 0.0
    %114 = vmatprep.subr.mxu0 0.0
    %115 = vmatpush1.msra.mxu0 0.0
    %116 = vmatprep.subr.mxu0 0.0
    %117 = vmatpush1.msra.mxu0 0.0
    %118 = vmatprep.subr.mxu0 0.0
    %119 = vmatpush1.msra.mxu0 0.0
    %120 = vmatprep.subr.mxu0 0.0
    %121 = vmatpush1.msra.mxu0 0.0
    %122 = vmatprep.subr.mxu0 0.0
    %123 = vmatpush1.msra.mxu0 0.0
    %124 = vmatprep.subr.mxu0 0.0
    %125 = vmatpush1.msra.mxu0 0.0
    %126 = vmatprep.subr.mxu0 0.0
    %127 = vmatpush1.msra.mxu0 0.0
    %128 = vmatprep.subr.mxu0 0.0
    %129 = vmatpush1.msra.mxu0 0.0
    %130 = vmatprep.subr.mxu0 0.0
    %131 = vmatpush1.msra.mxu0 0.0
    %132 = vmatprep.subr.mxu0 0.0
    %133 = vmatpush1.msra.mxu0 0.0
    %134 = vmatprep.subr.mxu0 0.0
    %135 = vmatpush1.msra.mxu0 0.0
    %136 = vmatprep.subr.mxu0 0.0
    %137 = vmatpush1.msra.mxu0 0.0
    %138 = vmatprep.subr.mxu0 0.0
    %139 = vmatpush1.msra.mxu0 0.0
    %140 = vmatprep.subr.mxu0 0.0
    %141 = vmatpush1.msra.mxu0 0.0
    %142 = vmatprep.subr.mxu0 0.0
    %143 = vmatpush1.msra.mxu0 0.0
    %144 = vmatprep.mubr.f32.mxu0 0.0
    %145 = vmatmul.mubr.f32.gmra.mrb[0].mxu0 %v69
    %v146 = vpop.f32.mrb[0].mxu0
    %v147 = vadd.f32 0.0, %v146
    %v148 = vpop.f32.mrb[0].mxu0
    %149 = vmatprep.mubr.f32.mxu0 0.0
    %150 = vmatmul.mubr.f32.gmra.mrb[0].mxu0 %v72
    %v151 = vpop.f32.mrb[0].mxu0
    %v152 = vadd.f32 0.0, %v151
    %v153 = vpop.f32.mrb[0].mxu0
    %154 = vmatprep.mubr.f32.mxu0 0.0
    %155 = vmatmul.mubr.f32.gmra.mrb[0].mxu0 %v75
    %v156 = vpop.f32.mrb[0].mxu0
    %v157 = vadd.f32 0.0, %v156
    %v158 = vpop.f32.mrb[0].mxu0
    %159 = vmatprep.mubr.f32.mxu0 0.0
    %160 = vmatmul.mubr.f32.gmra.mrb[0].mxu0 %v78
    %v161 = vpop.f32.mrb[0].mxu0
    %v162 = vadd.f32 0.0, %v161
    %v163 = vpop.f32.mrb[0].mxu0
    %164 = vdwg.mxu0
    %v165 = vld [vmem:[#allocation7] sm:$0xff]
    %v166 = vld [vmem:[#allocation7 + $0x8] sm:$0xff]
    %v167 = vld [vmem:[%s3] sm:$0x1]
    %170 = vrot.lane.b32.xlu0 %v147, 96
    %v171 = vpop.permute.xlu0 %170
    %172 = vrot.lane.b32.xlu0 %v152, 96
    %v173 = vpop.permute.xlu0 %172
    %v177 = vlaneseq
    %v178 = vshrl.u32 %v177, 7
    %v179 = vsub.s32 0, %v178
    %v180 = vrot.slane %v167, %v179
    %v183 = vsel %vm67, %v165, 0
    %v186 = vsel %vm67, %v166, 0
    %188 = vmatprep.subr.mxu0 0.0
    %189 = vmatpush1.msra.mxu0 %v147
    %190 = vmatprep.subr.mxu0 0.0
    %191 = vmatpush1.msra.mxu0 %v152
    %192 = vmatprep.subr.mxu0 0.0
    %193 = vmatpush1.msra.mxu0 %v171
    %194 = vmatprep.subr.mxu0 0.0
    %195 = vmatpush1.msra.mxu0 %v173
    %196 = vmatprep.subr.mxu0 0.0
    %197 = vmatpush1.msra.mxu0 0.0
    %198 = vmatprep.subr.mxu0 0.0
    %199 = vmatpush1.msra.mxu0 0.0
    %200 = vmatprep.subr.mxu0 0.0
    %201 = vmatpush1.msra.mxu0 0.0
    %202 = vmatprep.subr.mxu0 0.0
    %203 = vmatpush1.msra.mxu0 0.0
    %204 = vmatprep.subr.mxu0 0.0
    %205 = vmatpush1.msra.mxu0 0.0
    %206 = vmatprep.subr.mxu0 0.0
    %207 = vmatpush1.msra.mxu0 0.0
    %208 = vmatprep.subr.mxu0 0.0
    %209 = vmatpush1.msra.mxu0 0.0
    %210 = vmatprep.subr.mxu0 0.0
    %211 = vmatpush1.msra.mxu0 0.0
    %212 = vmatprep.subr.mxu0 0.0
    %213 = vmatpush1.msra.mxu0 0.0
    %214 = vmatprep.subr.mxu0 0.0
    %215 = vmatpush1.msra.mxu0 0.0
    %216 = vmatprep.subr.mxu0 0.0
    %217 = vmatpush1.msra.mxu0 0.0
    %218 = vmatprep.subr.mxu0 0.0
    %219 = vmatpush1.msra.mxu0 0.0
    %220 = vmatprep.subr.mxu0 0.0
    %221 = vmatpush1.msra.mxu0 0.0
    %222 = vmatprep.subr.mxu0 0.0
    %223 = vmatpush1.msra.mxu0 0.0
    %224 = vmatprep.subr.mxu0 0.0
    %225 = vmatpush1.msra.mxu0 0.0
    %226 = vmatprep.subr.mxu0 0.0
    %227 = vmatpush1.msra.mxu0 0.0
    %228 = vmatprep.subr.mxu0 0.0
    %229 = vmatpush1.msra.mxu0 0.0
    %230 = vmatprep.subr.mxu0 0.0
    %231 = vmatpush1.msra.mxu0 0.0
    %232 = vmatprep.subr.mxu0 0.0
    %233 = vmatpush1.msra.mxu0 0.0
    %234 = vmatprep.subr.mxu0 0.0
    %235 = vmatpush1.msra.mxu0 0.0
    %236 = vmatprep.subr.mxu0 0.0
    %237 = vmatpush1.msra.mxu0 0.0
    %238 = vmatprep.subr.mxu0 0.0
    %239 = vmatpush1.msra.mxu0 0.0
    %240 = vmatprep.subr.mxu0 0.0
    %241 = vmatpush1.msra.mxu0 0.0
    %242 = vmatprep.subr.mxu0 0.0
    %243 = vmatpush1.msra.mxu0 0.0
    %244 = vmatprep.subr.mxu0 0.0
    %245 = vmatpush1.msra.mxu0 0.0
    %246 = vmatprep.subr.mxu0 0.0
    %247 = vmatpush1.msra.mxu0 0.0
    %248 = vmatprep.subr.mxu0 0.0
    %249 = vmatpush1.msra.mxu0 0.0
    %250 = vmatprep.subr.mxu0 0.0
    %251 = vmatpush1.msra.mxu0 0.0
    %252 = vmatprep.mubr.f32.mxu0 0.0
    %253 = vmatmul.mubr.f32.gmra.mrb[0].mxu0 %v183
    %v254 = vpop.f32.mrb[0].mxu0
    %v255 = vadd.f32 %v180, %v254
    %v256 = vpop.f32.mrb[0].mxu0
    %257 = vmatprep.mubr.f32.mxu0 0.0
    %258 = vmatmul.mubr.f32.gmra.mrb[0].mxu0 %v186
    %v259 = vpop.f32.mrb[0].mxu0
    %v260 = vadd.f32 %v180, %v259
    %v261 = vpop.f32.mrb[0].mxu0
    %262 = vdwg.mxu0
    %263 = vst.msk [vmem:[#allocation8] sm:$0xff] %vm67, %v255
    %264 = vst.msk [vmem:[#allocation8 + $0x8] sm:$0xff] %vm67, %v260
    %267 = vrot.lane.b32.xlu0 %v157, 96
    %v268 = vpop.permute.xlu0 %267
    %269 = vrot.lane.b32.xlu0 %v162, 96
    %v270 = vpop.permute.xlu0 %269
    %273 = vmatprep.subr.mxu0 0.0
    %274 = vmatpush1.msra.mxu0 %v157
    %275 = vmatprep.subr.mxu0 0.0
    %276 = vmatpush1.msra.mxu0 %v162
    %277 = vmatprep.subr.mxu0 0.0
    %278 = vmatpush1.msra.mxu0 %v268
    %279 = vmatprep.subr.mxu0 0.0
    %280 = vmatpush1.msra.mxu0 %v270
    %281 = vmatprep.subr.mxu0 0.0
    %282 = vmatpush1.msra.mxu0 0.0
    %283 = vmatprep.subr.mxu0 0.0
    %284 = vmatpush1.msra.mxu0 0.0
    %285 = vmatprep.subr.mxu0 0.0
    %286 = vmatpush1.msra.mxu0 0.0
    %287 = vmatprep.subr.mxu0 0.0
    %288 = vmatpush1.msra.mxu0 0.0
    %289 = vmatprep.subr.mxu0 0.0
    %290 = vmatpush1.msra.mxu0 0.0
    %291 = vmatprep.subr.mxu0 0.0
    %292 = vmatpush1.msra.mxu0 0.0
    %293 = vmatprep.subr.mxu0 0.0
    %294 = vmatpush1.msra.mxu0 0.0
    %295 = vmatprep.subr.mxu0 0.0
    %296 = vmatpush1.msra.mxu0 0.0
    %297 = vmatprep.subr.mxu0 0.0
    %298 = vmatpush1.msra.mxu0 0.0
    %299 = vmatprep.subr.mxu0 0.0
    %300 = vmatpush1.msra.mxu0 0.0
    %301 = vmatprep.subr.mxu0 0.0
    %302 = vmatpush1.msra.mxu0 0.0
    %303 = vmatprep.subr.mxu0 0.0
    %304 = vmatpush1.msra.mxu0 0.0
    %305 = vmatprep.subr.mxu0 0.0
    %306 = vmatpush1.msra.mxu0 0.0
    %307 = vmatprep.subr.mxu0 0.0
    %308 = vmatpush1.msra.mxu0 0.0
    %309 = vmatprep.subr.mxu0 0.0
    %310 = vmatpush1.msra.mxu0 0.0
    %311 = vmatprep.subr.mxu0 0.0
    %312 = vmatpush1.msra.mxu0 0.0
    %313 = vmatprep.subr.mxu0 0.0
    %314 = vmatpush1.msra.mxu0 0.0
    %315 = vmatprep.subr.mxu0 0.0
    %316 = vmatpush1.msra.mxu0 0.0
    %317 = vmatprep.subr.mxu0 0.0
    %318 = vmatpush1.msra.mxu0 0.0
    %319 = vmatprep.subr.mxu0 0.0
    %320 = vmatpush1.msra.mxu0 0.0
    %321 = vmatprep.subr.mxu0 0.0
    %322 = vmatpush1.msra.mxu0 0.0
    %323 = vmatprep.subr.mxu0 0.0
    %324 = vmatpush1.msra.mxu0 0.0
    %325 = vmatprep.subr.mxu0 0.0
    %326 = vmatpush1.msra.mxu0 0.0
    %327 = vmatprep.subr.mxu0 0.0
    %328 = vmatpush1.msra.mxu0 0.0
    %329 = vmatprep.subr.mxu0 0.0
    %330 = vmatpush1.msra.mxu0 0.0
    %331 = vmatprep.subr.mxu0 0.0
    %332 = vmatpush1.msra.mxu0 0.0
    %333 = vmatprep.subr.mxu0 0.0
    %334 = vmatpush1.msra.mxu0 0.0
    %335 = vmatprep.subr.mxu0 0.0
    %336 = vmatpush1.msra.mxu0 0.0
    %337 = vmatprep.mubr.f32.mxu0 0.0
    %338 = vmatmul.mubr.f32.gmra.mrb[0].mxu0 %v183
    %v339 = vpop.f32.mrb[0].mxu0
    %v340 = vadd.f32 %v180, %v339
    %v341 = vpop.f32.mrb[0].mxu0
    %342 = vmatprep.mubr.f32.mxu0 0.0
    %343 = vmatmul.mubr.f32.gmra.mrb[0].mxu0 %v186
    %v344 = vpop.f32.mrb[0].mxu0
    %v345 = vadd.f32 %v180, %v344
    %v346 = vpop.f32.mrb[0].mxu0
    %347 = vdwg.mxu0
    %348 = vst.msk [vmem:[#allocation8 + $0x10] sm:$0xff] %vm67, %v340
    %349 = vst.msk [vmem:[#allocation8 + $0x18] sm:$0xff] %vm67, %v345
    // Predicated region
    $region30: #{tpu_custom_call.1} parent=1 // pred_check
      _
    $region31: #{tpu_custom_call.1} parent=1 // pred_check_branch
      %351 = sbr.rel (0) target = $region33
    $region32: #{tpu_custom_call.1} parent=1 // pred_region
      %s353 = ssub.s32 512, 512
      %354 = vsyncadd [#allocation4], %s353
      %s355 = sshll.u32 [#allocation8], 4
      %s356 = int_to_ptr.vmem [resolvable:$true] %s355
      %361 = dma.vmem_to_hbm [thread:$0]  %s356, 512, %s4, [#allocation4], 128, 128, 8
    $region33: #{tpu_custom_call.1} parent=1 // pred_fallthru
      _
    // Predicated region
    $region34: #{tpu_custom_call.1} parent=1 // pred_check
      _
    $region35: #{tpu_custom_call.1} parent=1 // pred_check_branch
      %363 = sbr.rel (0) target = $region37
    $region36: #{tpu_custom_call.1} parent=1 // pred_region
      %364 = dma.done [#allocation4], 512
    $region37: #{tpu_custom_call.1} parent=1 // pred_fallthru
      _
    %365 = vsyncpa [#allocation3], 1
    %366 = vsyncpa [#allocation6], 1
    %367 = vsyncpa [#allocation4], 1

</llo_original>
